<compile_context>
chip_gen: v7x
topology: tpu7x:2x2x1
jax: 0.10.0
libtpu: 0.0.40
codegen_flags: <defaults>
</compile_context>

<pallas_src>
import functools

import jax
import jax.numpy as jnp
from jax.experimental import pallas as pl
from jax.experimental.pallas import tpu as pltpu

_LANES = 128          # lane width; the class axis is padded to a multiple of this
_TOPK_LANES = 8       # top-3 indices live in lanes 0..2 of an 8-lane int32 row
_NEG_BIG = -1.0e30    # pad-class bias: exp() == 0, never max / top-3; avoids -inf edge cases


def ce_class_loss_kernel(x_ref, w_ref, b_ref, labels_ref, loss_ref, topk_ref, *,
                         total_rows):
    bt = x_ref.shape[0]
    c_pad = w_ref.shape[1]

    # ---- linear mapper (bf16 MXU path, f32 accumulation) ----
    logits = jnp.dot(x_ref[...], w_ref[...], preferred_element_type=jnp.float32)
    logits = logits + b_ref[...].astype(jnp.float32)                  # (bt, c_pad) f32

    class_ids = jax.lax.broadcasted_iota(jnp.int32, (bt, c_pad), 1)   # (bt, c_pad)

    # ---- cross entropy without materializing log-probs ----
    m = jnp.max(logits, axis=-1, keepdims=True)                       # (bt, 1)
    sumexp = jnp.sum(jnp.exp(logits - m), axis=-1, keepdims=True)     # (bt, 1)
    lse = m + jnp.log(sumexp)                                         # logsumexp

    labels = labels_ref[...]                                          # (bt, 1) int32
    label_logit = jnp.sum(jnp.where(class_ids == labels, logits, 0.0),
                          axis=-1, keepdims=True)                     # (bt, 1)
    nll = lse - label_logit                                           # (bt, 1)

    # mask rows of a ragged last tile; emit the per-tile SUM (true mean taken in wrapper)
    base = pl.program_id(0) * bt
    row_ids = jax.lax.broadcasted_iota(jnp.int32, (bt, 1), 0) + base
    partial = jnp.sum(jnp.where(row_ids < total_rows, nll, 0.0))
    loss_ref[...] = jnp.full((8, _LANES), partial, dtype=jnp.float32)

    # ---- top-3 class indices ----
    # top-1 reuses the softmax row max; min-index-at-max matches lax.top_k tie-breaking.
    idx0 = jnp.min(jnp.where(logits == m, class_ids, c_pad), axis=-1).astype(jnp.int32)
    work = jnp.where(class_ids == idx0[:, None], _NEG_BIG, logits)
    m1 = jnp.max(work, axis=-1, keepdims=True)
    idx1 = jnp.min(jnp.where(work == m1, class_ids, c_pad), axis=-1).astype(jnp.int32)
    work = jnp.where(class_ids == idx1[:, None], _NEG_BIG, work)
    m2 = jnp.max(work, axis=-1, keepdims=True)
    idx2 = jnp.min(jnp.where(work == m2, class_ids, c_pad), axis=-1).astype(jnp.int32)

    # single (bt, 8) int32 store: lanes 0..2 hold the indices (16x less writeback than 128).
    lane = class_ids[:, :_TOPK_LANES]        # reuse the class iota as the lane iota
    dense = (jnp.where(lane == 0, idx0[:, None], 0)
             + jnp.where(lane == 1, idx1[:, None], 0)
             + jnp.where(lane == 2, idx2[:, None], 0))
    topk_ref[...] = dense


def _vmem_capacity_bytes():
    try:
        return int(pltpu.get_tpu_info().vmem_capacity_bytes)
    except Exception:
        return 64 * 1024 * 1024   # conservative default (v7x per-TensorCore VMEM)


def ce_class_loss(batch, weight, bias, labels, *, batch_tile=256,
                  compute_dtype=jnp.bfloat16, core_parallel=False):
    """batch: (BS, D), weight: (D, C) (transposed vs torch), bias: (C,), labels: (BS,).

    Returns (batch-mean CE loss as f32 scalar, (BS, 3) int32 top-3 class indices).
    Set core_parallel=True on v7x (2 TensorCores) when n_tiles >= 2.
    """
    bs, d = batch.shape
    c = weight.shape[1]

    # --- pad the class axis to a lane-dense multiple of 128 (pads never win softmax/top-3)
    c_pad = max(_LANES, ((c + _LANES - 1) // _LANES) * _LANES)
    if c_pad != c:
        weight = jnp.pad(weight, ((0, 0), (0, c_pad - c)))
        bias = jnp.pad(bias, (0, c_pad - c), constant_values=_NEG_BIG)

    # --- low-precision matmul operands (f32 accumulation happens in-kernel) ---
    x = batch.astype(compute_dtype)
    w = weight.astype(compute_dtype)
    bias2d = bias.astype(jnp.float32).reshape(1, c_pad)
    labels2d = labels.astype(jnp.int32).reshape(bs, 1)

    # --- batch tile: cap so ~6 live (bt, c_pad) f32 intermediates stay within ~8 MiB ---
    bt = min(batch_tile, bs)
    bt_cap = max(8, ((8 * 1024 * 1024) // (6 * 4 * c_pad)) // 8 * 8)
    bt = min(bt, bt_cap)
    if bt != bs:
        bt = max(8, (bt // 8) * 8)          # keep batch tiles sublane-aligned
    n_tiles = pl.cdiv(bs, bt)

    # --- explicit VMEM budget: Buffered(1) W + double-buffered x + live intermediates ---
    in_bytes = jnp.dtype(compute_dtype).itemsize
    need = (2 * bt * d * in_bytes            # x (double-buffered stream)
            + d * c_pad * in_bytes           # W (single-buffered, resident)
            + c_pad * 4                      # bias (single-buffered)
            + 2 * bt * 4                     # labels (double-buffered)
            + 2 * 8 * _LANES * 4             # per-tile loss partial out
            + 2 * bt * _TOPK_LANES * 4       # top-3 out
            + 6 * bt * c_pad * 4)            # live logits/class_ids/work intermediates
    vmem_limit = int(need * 1.25) + (2 << 20)
    vmem_limit = max(16 << 20, min(vmem_limit, _vmem_capacity_bytes() - (8 << 20)))

    batch_sem = pltpu.CORE_PARALLEL if core_parallel else "parallel"

    loss_partials, topk_padded = pl.pallas_call(
        functools.partial(ce_class_loss_kernel, total_rows=bs),
        out_shape=(
            jax.ShapeDtypeStruct((n_tiles * 8, _LANES), jnp.float32),      # per-tile loss sums
            jax.ShapeDtypeStruct((n_tiles * bt, _TOPK_LANES), jnp.int32),  # top-3 (lanes 0..2)
        ),
        grid_spec=pltpu.PrefetchScalarGridSpec(
            num_scalar_prefetch=0,
            grid=(n_tiles,),
            in_specs=[
                pl.BlockSpec((bt, d), lambda i: (i, 0)),         # x: streamed per batch tile
                pl.BlockSpec((d, c_pad), lambda i: (0, 0),       # W: resident, DMA'd once,
                             pipeline_mode=pl.Buffered(1)),      #    single-buffered
                pl.BlockSpec((1, c_pad), lambda i: (0, 0),       # bias: resident
                             pipeline_mode=pl.Buffered(1)),
                pl.BlockSpec((bt, 1), lambda i: (i, 0)),         # labels: streamed per tile
            ],
            out_specs=[
                pl.BlockSpec((8, _LANES), lambda i: (i, 0)),         # per-tile loss sum block
                pl.BlockSpec((bt, _TOPK_LANES), lambda i: (i, 0)),   # per-tile top-3 block
            ],
        ),
        compiler_params=pltpu.CompilerParams(
            dimension_semantics=(batch_sem,),
            vmem_limit_bytes=vmem_limit,
        ),
    )(x, w, bias2d, labels2d)

    loss = jnp.sum(loss_partials[0::8, 0]) / bs     # true mean over the real batch size
    topk = topk_padded[:bs, :3]
    return loss, topk


def _reference(batch, weight, bias, labels, compute_dtype=jnp.bfloat16):
    # Matches the kernel's numerics: bf16 matmul operands, f32 accumulation.
    logits = jnp.dot(batch.astype(compute_dtype), weight.astype(compute_dtype),
                     preferred_element_type=jnp.float32) + bias
    logp = jax.nn.log_softmax(logits, axis=-1)
    nll = -jnp.take_along_axis(logp, labels[:, None].astype(jnp.int32), axis=-1)
    loss = jnp.mean(nll)
    topk = jax.lax.top_k(logits, 3)[1]
    return loss, topk


if __name__ == "__main__":
    BS, INP_DIM, N_CLASSES = 8, 32, 10

    key = jax.random.PRNGKey(0)
    kx, kw, kb, kl = jax.random.split(key, 4)

    batch = jax.random.normal(kx, (BS, INP_DIM), dtype=jnp.float32)
    # deterministic "PyTorch-like" Linear init: U(-1/sqrt(fan_in), 1/sqrt(fan_in))
    bound = 1.0 / (INP_DIM ** 0.5)
    weight = jax.random.uniform(kw, (INP_DIM, N_CLASSES), jnp.float32, -bound, bound)
    bias = jax.random.uniform(kb, (N_CLASSES,), jnp.float32, -bound, bound)
    labels = jax.random.randint(kl, (BS,), 0, N_CLASSES, dtype=jnp.int32)

    loss, topk = ce_class_loss(batch, weight, bias, labels)
    loss = jax.block_until_ready(loss)
    topk = jax.block_until_ready(topk)

    ref_loss, ref_topk = _reference(batch, weight, bias, labels)
    assert jnp.allclose(loss, ref_loss, atol=2e-5, rtol=2e-5), (loss, ref_loss)
    assert jnp.array_equal(topk, ref_topk), (topk, ref_topk)

    # module returns (loss_tensor, top3_indices_as_nested_list)
    _top3_list = topk.tolist()
    print("KERNEL_OK")
</pallas_src>

<mosaic_0001>
module attributes {stable_mosaic.version = 11 : i64} {
  func.func @ce_class_loss_kernel(%arg0: i32, %arg1: memref<8x32xbf16, #tpu.memory_space<vmem>>, %arg2: memref<32x128xbf16, #tpu.memory_space<vmem>>, %arg3: memref<1x128xf32, #tpu.memory_space<vmem>>, %arg4: memref<8x1xi32, #tpu.memory_space<vmem>>, %arg5: memref<8x128xf32, #tpu.memory_space<vmem>>, %arg6: memref<8x8xi32, #tpu.memory_space<vmem>>) attributes {dimension_semantics = [#tpu.dimension_semantics<parallel>], iteration_bounds = array<i64: 1>, scalar_prefetch = 0 : i64, scratch_operands = 0 : i64, tpu.core_type = #tpu.core_type<tc>, window_params = [{transform_indices = @transform_0, window_bounds = array<i64: 8, 32>}, {pipeline_mode = #tpu.pipeline_mode<synchronous>, transform_indices = @transform_1, window_bounds = array<i64: 32, 128>}, {pipeline_mode = #tpu.pipeline_mode<synchronous>, transform_indices = @transform_2, window_bounds = array<i64: 1, 128>}, {transform_indices = @transform_3, window_bounds = array<i64: 8, 1>}, {transform_indices = @transform_4, window_bounds = array<i64: 8, 128>}, {transform_indices = @transform_5, window_bounds = array<i64: 8, 8>}]} {
    %c0 = arith.constant 0 : index
    %c0_0 = arith.constant 0 : index
    %0 = vector.load %arg1[%c0, %c0_0] : memref<8x32xbf16, #tpu.memory_space<vmem>>, vector<8x32xbf16>
    %c0_1 = arith.constant 0 : index
    %c0_2 = arith.constant 0 : index
    %1 = vector.load %arg2[%c0_1, %c0_2] : memref<32x128xbf16, #tpu.memory_space<vmem>>, vector<32x128xbf16>
    %cst = arith.constant dense<0.000000e+00> : vector<8x128xf32>
    %2 = tpu.matmul %0, %1, %cst {dimension_numbers = #tpu.dot_dimension_numbers<[1], [0], [0], [1], [0, 0, 1, 1], [], []>} : vector<8x32xbf16>, vector<32x128xbf16>, vector<8x128xf32> -> vector<8x128xf32>
    %c0_3 = arith.constant 0 : index
    %c0_4 = arith.constant 0 : index
    %3 = vector.load %arg3[%c0_3, %c0_4] : memref<1x128xf32, #tpu.memory_space<vmem>>, vector<1x128xf32>
    %4 = vector.broadcast %3 : vector<1x128xf32> to vector<8x128xf32>
    %5 = arith.addf %2, %4 : vector<8x128xf32>
    %6 = tpu.iota {dimensions = array<i32: 1>} : vector<8x128xi32>
    %cst_5 = arith.constant dense<0xFF800000> : vector<8xf32>
    %7 = vector.multi_reduction <maximumf>, %5, %cst_5 [1] : vector<8x128xf32> to vector<8xf32>
    %8 = vector.shape_cast %7 : vector<8xf32> to vector<8x1xf32>
    %9 = vector.broadcast %8 : vector<8x1xf32> to vector<8x128xf32>
    %10 = arith.subf %5, %9 : vector<8x128xf32>
    %11 = math.exp %10 : vector<8x128xf32>
    %cst_6 = arith.constant dense<0.000000e+00> : vector<8xf32>
    %12 = vector.multi_reduction <add>, %11, %cst_6 [1] : vector<8x128xf32> to vector<8xf32>
    %13 = vector.shape_cast %12 : vector<8xf32> to vector<8x1xf32>
    %14 = math.log %13 : vector<8x1xf32>
    %15 = arith.addf %8, %14 : vector<8x1xf32>
    %c0_7 = arith.constant 0 : index
    %c0_8 = arith.constant 0 : index
    %16 = vector.load %arg4[%c0_7, %c0_8] : memref<8x1xi32, #tpu.memory_space<vmem>>, vector<8x1xi32>
    %17 = vector.broadcast %16 : vector<8x1xi32> to vector<8x128xi32>
    %18 = arith.cmpi eq, %6, %17 : vector<8x128xi32>
    %cst_9 = arith.constant 0.000000e+00 : f32
    %19 = vector.broadcast %cst_9 : f32 to vector<8x128xf32>
    %20 = arith.select %18, %5, %19 : vector<8x128xi1>, vector<8x128xf32>
    %cst_10 = arith.constant dense<0.000000e+00> : vector<8xf32>
    %21 = vector.multi_reduction <add>, %20, %cst_10 [1] : vector<8x128xf32> to vector<8xf32>
    %22 = vector.shape_cast %21 : vector<8xf32> to vector<8x1xf32>
    %23 = arith.subf %15, %22 : vector<8x1xf32>
    %c8_i32 = arith.constant 8 : i32
    %24 = arith.muli %arg0, %c8_i32 : i32
    %25 = tpu.iota {dimensions = array<i32: 0>} : vector<8x1xi32>
    %26 = vector.broadcast %24 : i32 to vector<8x1xi32>
    %27 = arith.addi %25, %26 : vector<8x1xi32>
    %c8_i32_11 = arith.constant 8 : i32
    %28 = vector.broadcast %c8_i32_11 : i32 to vector<8x1xi32>
    %29 = arith.cmpi slt, %27, %28 : vector<8x1xi32>
    %cst_12 = arith.constant 0.000000e+00 : f32
    %30 = vector.broadcast %cst_12 : f32 to vector<8x1xf32>
    %31 = arith.select %29, %23, %30 : vector<8x1xi1>, vector<8x1xf32>
    %32 = vector.shape_cast %31 : vector<8x1xf32> to vector<1x8x1xf32>
    %cst_13 = arith.constant dense<0.000000e+00> : vector<1xf32>
    %33 = vector.multi_reduction <add>, %32, %cst_13 [1, 2] : vector<1x8x1xf32> to vector<1xf32>
    %34 = vector.shape_cast %33 : vector<1xf32> to vector<1x1x1xf32>
    %35 = vector.extract %34[0, 0, 0] : f32 from vector<1x1x1xf32>
    %36 = vector.broadcast %35 : f32 to vector<8x128xf32>
    %c0_14 = arith.constant 0 : index
    %c0_15 = arith.constant 0 : index
    %37 = vector.load %arg5[%c0_14, %c0_15] : memref<8x128xf32, #tpu.memory_space<vmem>>, vector<8x128xf32>
    tpu.vector_store %arg5[%c0_14, %c0_15], %36 {strides = array<i32>} : memref<8x128xf32, #tpu.memory_space<vmem>>, vector<8x128xf32>,
    %38 = vector.broadcast %8 : vector<8x1xf32> to vector<8x128xf32>
    %39 = arith.cmpf oeq, %5, %38 : vector<8x128xf32>
    %c128_i32 = arith.constant 128 : i32
    %40 = vector.broadcast %c128_i32 : i32 to vector<8x128xi32>
    %41 = arith.select %39, %6, %40 : vector<8x128xi1>, vector<8x128xi32>
    %cst_16 = arith.constant dense<2147483647> : vector<8xi32>
    %42 = vector.multi_reduction <minsi>, %41, %cst_16 [1] : vector<8x128xi32> to vector<8xi32>
    %43 = vector.shape_cast %42 : vector<8xi32> to vector<8x1xi32>
    %44 = vector.broadcast %43 : vector<8x1xi32> to vector<8x128xi32>
    %45 = arith.cmpi eq, %6, %44 : vector<8x128xi32>
    %cst_17 = arith.constant -1.000000e+30 : f32
    %46 = vector.broadcast %cst_17 : f32 to vector<8x128xf32>
    %47 = arith.select %45, %46, %5 : vector<8x128xi1>, vector<8x128xf32>
    %cst_18 = arith.constant dense<0xFF800000> : vector<8xf32>
    %48 = vector.multi_reduction <maximumf>, %47, %cst_18 [1] : vector<8x128xf32> to vector<8xf32>
    %49 = vector.shape_cast %48 : vector<8xf32> to vector<8x1xf32>
    %50 = vector.broadcast %49 : vector<8x1xf32> to vector<8x128xf32>
    %51 = arith.cmpf oeq, %47, %50 : vector<8x128xf32>
    %c128_i32_19 = arith.constant 128 : i32
    %52 = vector.broadcast %c128_i32_19 : i32 to vector<8x128xi32>
    %53 = arith.select %51, %6, %52 : vector<8x128xi1>, vector<8x128xi32>
    %cst_20 = arith.constant dense<2147483647> : vector<8xi32>
    %54 = vector.multi_reduction <minsi>, %53, %cst_20 [1] : vector<8x128xi32> to vector<8xi32>
    %55 = vector.shape_cast %54 : vector<8xi32> to vector<8x1xi32>
    %56 = vector.broadcast %55 : vector<8x1xi32> to vector<8x128xi32>
    %57 = arith.cmpi eq, %6, %56 : vector<8x128xi32>
    %cst_21 = arith.constant -1.000000e+30 : f32
    %58 = vector.broadcast %cst_21 : f32 to vector<8x128xf32>
    %59 = arith.select %57, %58, %47 : vector<8x128xi1>, vector<8x128xf32>
    %cst_22 = arith.constant dense<0xFF800000> : vector<8xf32>
    %60 = vector.multi_reduction <maximumf>, %59, %cst_22 [1] : vector<8x128xf32> to vector<8xf32>
    %61 = vector.shape_cast %60 : vector<8xf32> to vector<8x1xf32>
    %62 = vector.broadcast %61 : vector<8x1xf32> to vector<8x128xf32>
    %63 = arith.cmpf oeq, %59, %62 : vector<8x128xf32>
    %c128_i32_23 = arith.constant 128 : i32
    %64 = vector.broadcast %c128_i32_23 : i32 to vector<8x128xi32>
    %65 = arith.select %63, %6, %64 : vector<8x128xi1>, vector<8x128xi32>
    %cst_24 = arith.constant dense<2147483647> : vector<8xi32>
    %66 = vector.multi_reduction <minsi>, %65, %cst_24 [1] : vector<8x128xi32> to vector<8xi32>
    %67 = vector.extract_strided_slice %6 {offsets = [0, 0], sizes = [8, 8], strides = [1, 1]} : vector<8x128xi32> to vector<8x8xi32>
    %c0_i32 = arith.constant 0 : i32
    %68 = vector.broadcast %c0_i32 : i32 to vector<8x8xi32>
    %69 = arith.cmpi eq, %67, %68 : vector<8x8xi32>
    %70 = vector.shape_cast %42 : vector<8xi32> to vector<8x1xi32>
    %c0_i32_25 = arith.constant 0 : i32
    %71 = vector.shape_cast %70 : vector<8x1xi32> to vector<8x1xi32>
    %72 = vector.broadcast %71 : vector<8x1xi32> to vector<8x8xi32>
    %73 = vector.broadcast %c0_i32_25 : i32 to vector<8x8xi32>
    %74 = arith.select %69, %72, %73 : vector<8x8xi1>, vector<8x8xi32>
    %c1_i32 = arith.constant 1 : i32
    %75 = vector.broadcast %c1_i32 : i32 to vector<8x8xi32>
    %76 = arith.cmpi eq, %67, %75 : vector<8x8xi32>
    %77 = vector.shape_cast %54 : vector<8xi32> to vector<8x1xi32>
    %c0_i32_26 = arith.constant 0 : i32
    %78 = vector.shape_cast %77 : vector<8x1xi32> to vector<8x1xi32>
    %79 = vector.broadcast %78 : vector<8x1xi32> to vector<8x8xi32>
    %80 = vector.broadcast %c0_i32_26 : i32 to vector<8x8xi32>
    %81 = arith.select %76, %79, %80 : vector<8x8xi1>, vector<8x8xi32>
    %82 = arith.addi %74, %81 : vector<8x8xi32>
    %c2_i32 = arith.constant 2 : i32
    %83 = vector.broadcast %c2_i32 : i32 to vector<8x8xi32>
    %84 = arith.cmpi eq, %67, %83 : vector<8x8xi32>
    %85 = vector.shape_cast %66 : vector<8xi32> to vector<8x1xi32>
    %c0_i32_27 = arith.constant 0 : i32
    %86 = vector.shape_cast %85 : vector<8x1xi32> to vector<8x1xi32>
    %87 = vector.broadcast %86 : vector<8x1xi32> to vector<8x8xi32>
    %88 = vector.broadcast %c0_i32_27 : i32 to vector<8x8xi32>
    %89 = arith.select %84, %87, %88 : vector<8x8xi1>, vector<8x8xi32>
    %90 = arith.addi %82, %89 : vector<8x8xi32>
    %c0_28 = arith.constant 0 : index
    %c0_29 = arith.constant 0 : index
    %91 = vector.load %arg6[%c0_28, %c0_29] : memref<8x8xi32, #tpu.memory_space<vmem>>, vector<8x8xi32>
    tpu.vector_store %arg6[%c0_28, %c0_29], %90 {strides = array<i32>} : memref<8x8xi32, #tpu.memory_space<vmem>>, vector<8x8xi32>,
    return
  }
  func.func @transform_0(%arg0: i32) -> (i32, i32) {
    %c0_i32 = arith.constant 0 : i32
    %c0_i32_0 = arith.constant 0 : i32
    return %arg0, %c0_i32 : i32, i32
  }
  func.func @transform_1(%arg0: i32) -> (i32, i32) {
    %c0_i32 = arith.constant 0 : i32
    %c0_i32_0 = arith.constant 0 : i32
    %c0_i32_1 = arith.constant 0 : i32
    return %c0_i32, %c0_i32_0 : i32, i32
  }
  func.func @transform_2(%arg0: i32) -> (i32, i32) {
    %c0_i32 = arith.constant 0 : i32
    %c0_i32_0 = arith.constant 0 : i32
    %c0_i32_1 = arith.constant 0 : i32
    return %c0_i32, %c0_i32_0 : i32, i32
  }
  func.func @transform_3(%arg0: i32) -> (i32, i32) {
    %c0_i32 = arith.constant 0 : i32
    %c0_i32_0 = arith.constant 0 : i32
    return %arg0, %c0_i32 : i32, i32
  }
  func.func @transform_4(%arg0: i32) -> (i32, i32) {
    %c0_i32 = arith.constant 0 : i32
    %c0_i32_0 = arith.constant 0 : i32
    return %arg0, %c0_i32 : i32, i32
  }
  func.func @transform_5(%arg0: i32) -> (i32, i32) {
    %c0_i32 = arith.constant 0 : i32
    %c0_i32_0 = arith.constant 0 : i32
    return %arg0, %c0_i32 : i32, i32
  }
}

</mosaic_0001>

<llo_original>
// kernel: tpu_custom_call.1
$region0: #{tpu_custom_call.1}
  #allocation0 [shape = 'u32[]', space=smem, size = 0x4, offset = 0x4, fixed_abs, tag = 'smem constant byte address 0x4 - core index']
  #allocation1 [shape = 'u32[144,128]{1,0:T(1,128)}', space=vmem, size = 0x12000, scoped, tag = 'internal scratch']
  %s0 = inlined_call_operand.vmem [shape: bf16[8,32], index: 0, kind: input, shape index: {}]
  %s1 = inlined_call_operand.hbm [shape: bf16[32,128], index: 1, kind: input, shape index: {}]
  %s2 = inlined_call_operand.vmem [shape: f32[1,128], index: 2, kind: input, shape index: {}]
  %s3 = inlined_call_operand.vmem [shape: s32[8,1], index: 3, kind: input, shape index: {}]
  %s4 = inlined_call_operand.hbm [shape: f32[8,128], index: 4, kind: output, shape index: {0}]
  %s5 = inlined_call_operand.hbm [shape: s32[8,8], index: 5, kind: output, shape index: {1}]
  %6 = xla_tuple %s4, %s5
  %s7 = sld [smem:[#allocation0]]
  $region38: #{tpu_custom_call.1} parent=0
    _
  %s9 = ssub.s32 1, %s7
  %s10 = scalar_select 0, %s9, %s7
  $region1: #{tpu_custom_call.1} parent=0
    #allocation2 [shape = 'u8[8192]{0}', space=vmem, size = 0x2000, scoped, tag = 'input window, operand 1, single buffered']
    #allocation3 [shape = 's32[1]{0}', space=sflag, size = 0x4, scoped, tag = 'scoped memory for tpu_custom_call.1']
    #allocation4 [shape = 's32[1]{0}', space=sflag, size = 0x4, scoped, tag = 'scoped memory for tpu_custom_call.1']
    #allocation5 [shape = 'u8[4096]{0}', space=vmem, size = 0x1000, scoped, tag = 'output window, operand 0, single buffered']
    #allocation6 [shape = 'u8[4096]{0}', space=vmem, size = 0x1000, scoped, tag = 'output window, operand 1, single buffered']
    #allocation7 [shape = 's32[1]{0}', space=sflag, size = 0x4, scoped, tag = 'scoped memory for tpu_custom_call.1']
    %11 = vsyncpa [#allocation3], 0
    %12 = vsyncpa [#allocation4], 0
    %13 = vsyncpa [#allocation7], 0
    // Predicated region
    $region2: #{tpu_custom_call.1} parent=1 // pred_check
      _
    $region3: #{tpu_custom_call.1} parent=1 // pred_check_branch
      %15 = sbr.rel (0) target = $region5
    $region4: #{tpu_custom_call.1} parent=1 // pred_region
      _
    $region5: #{tpu_custom_call.1} parent=1 // pred_fallthru
      _
    // Predicated region
    $region6: #{tpu_custom_call.1} parent=1 // pred_check
      _
    $region7: #{tpu_custom_call.1} parent=1 // pred_check_branch
      %17 = sbr.rel (0) target = $region9
    $region8: #{tpu_custom_call.1} parent=1 // pred_region
      %s19 = ssub.s32 256, 256
      %20 = vsyncadd [#allocation3], %s19
      %s21 = sshll.u32 [#allocation2], 4
      %s22 = int_to_ptr.vmem [resolvable:$true] %s21
      %27 = dma.hbm_to_vmem [thread:$0]  %s1, 256, %s22, [#allocation3], 64, 64, 4
    $region9: #{tpu_custom_call.1} parent=1 // pred_fallthru
      _
    // Predicated region
    $region10: #{tpu_custom_call.1} parent=1 // pred_check
      _
    $region11: #{tpu_custom_call.1} parent=1 // pred_check_branch
      %29 = sbr.rel (0) target = $region13
    $region12: #{tpu_custom_call.1} parent=1 // pred_region
      _
    $region13: #{tpu_custom_call.1} parent=1 // pred_fallthru
      _
    // Predicated region
    $region14: #{tpu_custom_call.1} parent=1 // pred_check
      _
    $region15: #{tpu_custom_call.1} parent=1 // pred_check_branch
      %31 = sbr.rel (0) target = $region17
    $region16: #{tpu_custom_call.1} parent=1 // pred_region
      _
    $region17: #{tpu_custom_call.1} parent=1 // pred_fallthru
      _
    // Predicated region
    $region18: #{tpu_custom_call.1} parent=1 // pred_check
      _
    $region19: #{tpu_custom_call.1} parent=1 // pred_check_branch
      %33 = sbr.rel (0) target = $region21
    $region20: #{tpu_custom_call.1} parent=1 // pred_region
      %34 = dma.done [#allocation3], 256
    $region21: #{tpu_custom_call.1} parent=1 // pred_fallthru
      _
    %v36 = vld [vmem:[%s0] sm:$0xf]
    %v37 = vld [vmem:[#allocation2] sm:$0xf]
    %v38 = vld [vmem:[#allocation2 + $0x4] sm:$0xf]
    %v39 = vld [vmem:[#allocation2 + $0x8] sm:$0xf]
    %v40 = vld [vmem:[#allocation2 + $0xc] sm:$0xf]
    %v41 = vld [vmem:[%s2] sm:$0x1]
    %v43 = vlaneseq
    %v44 = vshrl.u32 %v43, 7
    %v45 = vsub.s32 0, %v44
    %v46 = vrot.slane %v41, %v45
    %v52 = vunpack.c.l.b16 %v37
    %v53 = vunpack.c.l.b16 %v38
    %v54 = vunpack.c.l.b16 %v39
    %v55 = vunpack.c.l.b16 %v40
    %v56 = vpack.c.b16 %v53, %v52
    %v57 = vpack.c.b16 %v55, %v54
    %vm60 = vcmask 261120
    %v62 = vsel %vm60, %v36, 0
    %64 = vmatprep.subr.bf16.mxu0 0
    %65 = vmatpush1.bf16.msra.mxu0 %v56
    %66 = vmatprep.subr.bf16.mxu0 0
    %67 = vmatpush1.bf16.msra.mxu0 %v57
    %68 = vmatprep.subr.bf16.mxu0 0
    %69 = vmatpush1.bf16.msra.mxu0 0
    %70 = vmatprep.subr.bf16.mxu0 0
    %71 = vmatpush1.bf16.msra.mxu0 0
    %72 = vmatprep.subr.bf16.mxu0 0
    %73 = vmatpush1.bf16.msra.mxu0 0
    %74 = vmatprep.subr.bf16.mxu0 0
    %75 = vmatpush1.bf16.msra.mxu0 0
    %76 = vmatprep.subr.bf16.mxu0 0
    %77 = vmatpush1.bf16.msra.mxu0 0
    %78 = vmatprep.subr.bf16.mxu0 0
    %79 = vmatpush1.bf16.msra.mxu0 0
    %80 = vmatprep.subr.bf16.mxu0 0
    %81 = vmatpush1.bf16.msra.mxu0 0
    %82 = vmatprep.subr.bf16.mxu0 0
    %83 = vmatpush1.bf16.msra.mxu0 0
    %84 = vmatprep.subr.bf16.mxu0 0
    %85 = vmatpush1.bf16.msra.mxu0 0
    %86 = vmatprep.subr.bf16.mxu0 0
    %87 = vmatpush1.bf16.msra.mxu0 0
    %88 = vmatprep.subr.bf16.mxu0 0
    %89 = vmatpush1.bf16.msra.mxu0 0
    %90 = vmatprep.subr.bf16.mxu0 0
    %91 = vmatpush1.bf16.msra.mxu0 0
    %92 = vmatprep.subr.bf16.mxu0 0
    %93 = vmatpush1.bf16.msra.mxu0 0
    %94 = vmatprep.subr.bf16.mxu0 0
    %95 = vmatpush1.bf16.msra.mxu0 0
    %96 = vmatprep.mubr.bf16.mxu0 0
    %97 = vmatmul.mubr.bf16.gmra.mrb[0].mxu0 %v62
    %v98 = vpop.f32.mrb[0].mxu0
    %v99 = vadd.f32 %v46, %v98
    %v100 = vpop.f32.mrb[0].mxu0
    %v101 = vpop.f32.mrb[0].mxu0
    %v102 = vpop.f32.mrb[0].mxu0
    %103 = vdwg.mxu0
    %v104 = vlaneseq
    %v105 = vand.u32 %v104, 127
    %106 = vmax.xlane.f32.xlu0 %v99
    %v107 = vpop.xlane.xlu0 %106
    %v108 = vsub.f32 %v99, %v107
    %v109 = vmul.f32 %v108, 1.442695
    %v110 = vpow.pop %v109
    %111 = vadd.xlane.f32.xlu0 %v110
    %v112 = vpop.xlane.xlu0 %111
    %v113 = vlog2.pop %v112
    %v114 = vmul.f32 %v113, 0.6931472
    %v115 = vadd.f32 %v107, %v114
    %v116 = vld [vmem:[%s3] sm:$0xff]
    %117 = vset.pattern.permute.xlu0 0
    %118 = vperm.xlu0 %117, %v116
    %v119 = vpop.permute.xlu0 %118
    %vm120 = vcmp.eq.s32.totalorder %v105, %v119
    %v121 = vsel %vm120, %v99, 0.0
    %122 = vadd.xlane.f32.xlu0 %v121
    %v123 = vpop.xlane.xlu0 %122
    %v124 = vsub.f32 %v115, %v123
    %s125 = smul.u32 0, 8
    %v126 = vlaneseq
    %v127 = vshrl.u32 %v126, 7
    %v128 = vstv %s125
    %v129 = vadd.s32 %v127, %v128
    %vm130 = vcmp.lt.s32.totalorder %v129, 8
    %v131 = vsel %vm130, %v124, 0.0
    %vm132 = vcmask 7168
    %v133 = vsel %vm132, %v131, 0.0
    %134 = vadd.xlane.f32.xlu0 %v133
    %v135 = vpop.xlane.xlu0 %134
    %v136 = vrot.slane %v135, 4
    %v137 = vadd.f32 %v135, %v136
    %v138 = vrot.slane %v137, 2
    %v139 = vadd.f32 %v137, %v138
    %v140 = vrot.slane %v139, 1
    %v141 = vadd.f32 %v139, %v140
    %s142 = vtos %v141
    %v143 = vstv %s142
    %144 = vst [vmem:[#allocation5] sm:$0xff] %v143
    %vm145 = vcmp.eq.f32.partialorder %v99, %v107
    %v146 = vsel %vm145, %v105, 128
    %v147 = vand.u32 %v146, 65535
    %v148 = vshra.s32 %v146, 16
    %v149 = vcvt.s32.f32 %v147
    %v150 = vcvt.s32.f32 %v148
    %151 = vmin.xlane.f32.xlu0 %v150
    %v152 = vpop.xlane.xlu0 %151
    %vm153 = vcmp.eq.f32.partialorder %v150, %v152
    %v154 = vsel %vm153, %v149, inf
    %155 = vmin.xlane.f32.xlu0 %v154
    %v156 = vpop.xlane.xlu0 %155
    %v157 = vcvt.f32.s32 %v156
    %v158 = vcvt.f32.s32 %v152
    %v159 = vshll.u32 %v158, 16
    %v160 = vadd.s32 %v159, %v157
    %vm161 = vcmp.eq.s32.totalorder %v105, %v160
    %v162 = vsel %vm161, -1e+30, %v99
    %163 = vmax.xlane.f32.xlu0 %v162
    %v164 = vpop.xlane.xlu0 %163
    %vm165 = vcmp.eq.f32.partialorder %v162, %v164
    %v166 = vsel %vm165, %v105, 128
    %v167 = vand.u32 %v166, 65535
    %v168 = vshra.s32 %v166, 16
    %v169 = vcvt.s32.f32 %v167
    %v170 = vcvt.s32.f32 %v168
    %171 = vmin.xlane.f32.xlu0 %v170
    %v172 = vpop.xlane.xlu0 %171
    %vm173 = vcmp.eq.f32.partialorder %v170, %v172
    %v174 = vsel %vm173, %v169, inf
    %175 = vmin.xlane.f32.xlu0 %v174
    %v176 = vpop.xlane.xlu0 %175
    %v177 = vcvt.f32.s32 %v176
    %v178 = vcvt.f32.s32 %v172
    %v179 = vshll.u32 %v178, 16
    %v180 = vadd.s32 %v179, %v177
    %vm181 = vcmp.eq.s32.totalorder %v105, %v180
    %v182 = vsel %vm181, -1e+30, %v162
    %183 = vmax.xlane.f32.xlu0 %v182
    %v184 = vpop.xlane.xlu0 %183
    %vm185 = vcmp.eq.f32.partialorder %v182, %v184
    %v186 = vsel %vm185, %v105, 128
    %v187 = vand.u32 %v186, 65535
    %v188 = vshra.s32 %v186, 16
    %v189 = vcvt.s32.f32 %v187
    %v190 = vcvt.s32.f32 %v188
    %191 = vmin.xlane.f32.xlu0 %v190
    %v192 = vpop.xlane.xlu0 %191
    %vm193 = vcmp.eq.f32.partialorder %v190, %v192
    %v194 = vsel %vm193, %v189, inf
    %195 = vmin.xlane.f32.xlu0 %v194
    %v196 = vpop.xlane.xlu0 %195
    %v197 = vcvt.f32.s32 %v196
    %v198 = vcvt.f32.s32 %v192
    %v199 = vshll.u32 %v198, 16
    %v200 = vadd.s32 %v199, %v197
    %vm201 = vcmp.eq.s32.totalorder %v105, 0
    %v202 = vsel %vm201, %v160, 0
    %vm203 = vcmp.eq.s32.totalorder %v105, 1
    %v204 = vsel %vm203, %v180, 0
    %v205 = vadd.s32 %v202, %v204
    %vm206 = vcmp.eq.s32.totalorder %v105, 2
    %v207 = vsel %vm206, %v200, 0
    %v208 = vadd.s32 %v205, %v207
    %vm209 = vcmask 64512
    %210 = vst.msk [vmem:[#allocation6] sm:$0xff] %vm209, %v208
    // Predicated region
    $region22: #{tpu_custom_call.1} parent=1 // pred_check
      _
    $region23: #{tpu_custom_call.1} parent=1 // pred_check_branch
      %212 = sbr.rel (0) target = $region25
    $region24: #{tpu_custom_call.1} parent=1 // pred_region
      %s214 = ssub.s32 128, 128
      %215 = vsyncadd [#allocation4], %s214
      %s217 = sshll.u32 [#allocation5], 4
      %s218 = int_to_ptr.vmem [resolvable:$true] %s217
      %220 = dma.vmem_to_hbm [thread:$0]  %s218, 128, %s4, [#allocation4]
    $region25: #{tpu_custom_call.1} parent=1 // pred_fallthru
      _
    // Predicated region
    $region26: #{tpu_custom_call.1} parent=1 // pred_check
      _
    $region27: #{tpu_custom_call.1} parent=1 // pred_check_branch
      %222 = sbr.rel (0) target = $region29
    $region28: #{tpu_custom_call.1} parent=1 // pred_region
      %s224 = ssub.s32 128, 128
      %225 = vsyncadd [#allocation7], %s224
      %s227 = sshll.u32 [#allocation6], 4
      %s228 = int_to_ptr.vmem [resolvable:$true] %s227
      %230 = dma.vmem_to_hbm [thread:$0]  %s228, 128, %s5, [#allocation7]
    $region29: #{tpu_custom_call.1} parent=1 // pred_fallthru
      _
    // Predicated region
    $region30: #{tpu_custom_call.1} parent=1 // pred_check
      _
    $region31: #{tpu_custom_call.1} parent=1 // pred_check_branch
      %232 = sbr.rel (0) target = $region33
    $region32: #{tpu_custom_call.1} parent=1 // pred_region
      %233 = dma.done [#allocation4], 128
    $region33: #{tpu_custom_call.1} parent=1 // pred_fallthru
      _
    // Predicated region
    $region34: #{tpu_custom_call.1} parent=1 // pred_check
      _
    $region35: #{tpu_custom_call.1} parent=1 // pred_check_branch
      %235 = sbr.rel (0) target = $region37
    $region36: #{tpu_custom_call.1} parent=1 // pred_region
      %236 = dma.done [#allocation7], 128
    $region37: #{tpu_custom_call.1} parent=1 // pred_fallthru
      _
    %237 = vsyncpa [#allocation3], 1
    %238 = vsyncpa [#allocation4], 1
    %239 = vsyncpa [#allocation7], 1

</llo_original>
